<compile_context>
chip_gen: v5e
topology: v5e:2x2
jax: 0.10.0
libtpu: 0.0.40
codegen_flags: <defaults>
</compile_context>

<pallas_src>
import jax
import jax.numpy as jnp
from jax import lax
from jax.experimental import pallas as pl
from jax.experimental.pallas import tpu as pltpu

_HP = lax.Precision.HIGHEST
_LANE = 128

_CPARAMS = pltpu.CompilerParams(
    dimension_semantics=("parallel", "parallel"),
    vmem_limit_bytes=48 * 1024 * 1024,   # < 64 MiB physical on v7x, ample on v5e/v6e
)


# ---------------------------------------------------------------------------
# Pallas kernels.  In-kernel data layout: (channels, spatial_tile) with
# channels on the sublane axis and spatial locations on the lane axis.
# ---------------------------------------------------------------------------

def _make_front_kernel(S, ts):
    def kernel(g_ref, x_ref, ag_ref, bg_ref, ax_ref, bx_ref,
               prod_ref, pool_ref, xsum_ref):
        # W_g(g) * W_x(x)  (1x1x1 convs, BN folded into A,b) + ChannelPool3D(g)
        g = g_ref[0]                                   # (ch_1, tS) f32
        x = x_ref[0]                                   # (ch_2, tS) f32
        wg = jnp.dot(ag_ref[...], g, preferred_element_type=jnp.float32) + bg_ref[...]
        wx = jnp.dot(ax_ref[...], x, preferred_element_type=jnp.float32) + bx_ref[...]
        prod_ref[0] = (wg * wx).astype(prod_ref.dtype)

        gmax = jnp.max(g, axis=0, keepdims=True)       # (1, tS)
        gmean = jnp.mean(g, axis=0, keepdims=True)     # (1, tS)
        # build the 2-channel [max; mean] stack without a sublane concatenate
        row = lax.broadcasted_iota(jnp.int32, pool_ref.shape[1:], 0)   # (2, tS)
        pool_ref[0] = jnp.where(row == 0, gmax, gmean).astype(pool_ref.dtype)

        # SE-gate numerator: per-tile partial sum of x over the lane axis.
        # Out-of-range lanes of a trailing partial tile are masked to zero.
        col = pl.program_id(1) * ts + lax.broadcasted_iota(jnp.int32, x.shape, 1)
        psum = jnp.sum(jnp.where(col < S, x, 0.0), axis=1, keepdims=True)  # (ch_2, 1)
        xsum_ref[0] = jnp.broadcast_to(psum, xsum_ref.shape[1:])
    return kernel


def _make_mid_kernel(ch_1, ch_2, ch_int, ch_mid, ch_out, need_skip):
    def kernel(*refs):
        if need_skip:
            (g_ref, x_ref, gate_ref, sp_ref, bpr_ref,
             w_ref, s1_ref, c1_ref, b1_ref, s2_ref, c2_ref, wbb_ref, tsp_ref,
             bsk_ref, res_ref, t2_ref, cat_ref) = refs
        else:
            (g_ref, x_ref, gate_ref, sp_ref, bpr_ref,
             w_ref, s1_ref, c1_ref, b1_ref, s2_ref, c2_ref, wbb_ref, tsp_ref,
             res_ref, t2_ref, cat_ref) = refs

        g = g_ref[0]                                       # (ch_1, tS) f32 raw g
        x = x_ref[0]                                       # (ch_2, tS) f32 raw x
        # spatial-BN shift folded here; scale was folded into the conv weights
        sp = sp_ref[0].astype(jnp.float32) + tsp_ref[...]  # (1, tS)
        # self.W: BN scale folded into conv weights, (scale*bias + shift) here
        bp = jnp.maximum(bpr_ref[0].astype(jnp.float32) + wbb_ref[...], 0.0)

        # virtual concat [g_att; x_att; bp] staged once in a VMEM scratch
        cat_ref[0:ch_1, :] = jax.nn.sigmoid(sp) * g                 # spatial attention
        cat_ref[ch_1:ch_1 + ch_2, :] = gate_ref[0] * x              # SE attention
        cat_ref[ch_1 + ch_2:ch_1 + ch_2 + ch_int, :] = bp
        cat = cat_ref[...]                                          # (inp, tS) f32

        # Residual3D skip
        if need_skip:
            res = (jnp.dot(w_ref[ch_mid:ch_mid + ch_out, :], cat,
                           preferred_element_type=jnp.float32) + bsk_ref[...])
        else:
            res = cat                                   # identity skip (inp == ch_out)
        res_ref[0] = res.astype(res_ref.dtype)

        # bn1 + relu, conv1 (1x1), bn2 + relu
        t0 = jnp.maximum(s1_ref[...] * cat + c1_ref[...], 0.0)
        t1 = (jnp.dot(w_ref[0:ch_mid, :], t0, preferred_element_type=jnp.float32)
              + b1_ref[...])
        t2_ref[0] = jnp.maximum(s2_ref[...] * t1 + c2_ref[...], 0.0).astype(t2_ref.dtype)
    return kernel


def _back_kernel(t3_ref, res_ref, c3c_ref, a3_ref, b3_ref, o_ref):
    # bn3 (scale folded into conv2 weights) + relu + conv3 (1x1) + residual add
    t4 = jnp.maximum(t3_ref[0].astype(jnp.float32) + c3c_ref[...], 0.0)
    y = (jnp.dot(a3_ref[...], t4, preferred_element_type=jnp.float32)
         + b3_ref[...] + res_ref[0].astype(jnp.float32))
    o_ref[0] = y.astype(o_ref.dtype)


# ---------------------------------------------------------------------------
# pallas_call wrappers
# ---------------------------------------------------------------------------

def _data_spec(c, ts):
    return pl.BlockSpec((1, c, ts), lambda n, s: (n, 0, s))


def _pern_spec(c):
    return pl.BlockSpec((1, c, 1), lambda n, s: (n, 0, 0))


def _w_spec(a):
    return pl.BlockSpec(a.shape, lambda n, s: (0,) * a.ndim)


def _pallas_front(g3, x3, Ag, bg, Ax, bx, ts, inter_dtype):
    N, ch_1, S = g3.shape
    ch_2 = x3.shape[1]
    ch_int = Ag.shape[0]
    n_s = -(-S // ts)
    return pl.pallas_call(
        _make_front_kernel(S, ts),
        out_shape=(jax.ShapeDtypeStruct((N, ch_int, S), inter_dtype),
                   jax.ShapeDtypeStruct((N, 2, S), jnp.float32),
                   jax.ShapeDtypeStruct((N, ch_2, n_s * _LANE), jnp.float32)),
        grid_spec=pltpu.PrefetchScalarGridSpec(
            num_scalar_prefetch=0,
            grid=(N, n_s),
            in_specs=[_data_spec(ch_1, ts), _data_spec(ch_2, ts),
                      _w_spec(Ag), _w_spec(bg), _w_spec(Ax), _w_spec(bx)],
            out_specs=[_data_spec(ch_int, ts), _data_spec(2, ts),
                       pl.BlockSpec((1, ch_2, _LANE), lambda n, s: (n, 0, s))],
        ),
        compiler_params=_CPARAMS,
    )(g3, x3, Ag, bg, Ax, bx)


def _pallas_mid(g3, x3, se_gate, spc, bpr, weights, bsk, ch_mid, ch_out, ts,
                inter_dtype):
    N, ch_1, S = g3.shape
    ch_2 = x3.shape[1]
    ch_int = bpr.shape[1]
    inp = ch_1 + ch_2 + ch_int
    need_skip = bsk is not None
    n_s = -(-S // ts)
    operands = [g3, x3, se_gate, spc, bpr, *weights] + ([bsk] if need_skip else [])
    in_specs = ([_data_spec(ch_1, ts), _data_spec(ch_2, ts), _pern_spec(ch_2),
                 _data_spec(1, ts), _data_spec(ch_int, ts)]
                + [_w_spec(w) for w in weights]
                + ([_w_spec(bsk)] if need_skip else []))
    return pl.pallas_call(
        _make_mid_kernel(ch_1, ch_2, ch_int, ch_mid, ch_out, need_skip),
        out_shape=(jax.ShapeDtypeStruct((N, ch_out, S), inter_dtype),
                   jax.ShapeDtypeStruct((N, ch_mid, S), inter_dtype)),
        grid_spec=pltpu.PrefetchScalarGridSpec(
            num_scalar_prefetch=0,
            grid=(N, n_s),
            in_specs=in_specs,
            out_specs=[_data_spec(ch_out, ts), _data_spec(ch_mid, ts)],
            scratch_shapes=[pltpu.VMEM((inp, ts), jnp.float32)],
        ),
        compiler_params=_CPARAMS,
    )(*operands)


def _pallas_back(t3, res, c3c, A3, b3, ts, out_dtype):
    N, ch_mid, S = t3.shape
    ch_out = A3.shape[0]
    n_s = -(-S // ts)
    return pl.pallas_call(
        _back_kernel,
        out_shape=jax.ShapeDtypeStruct((N, ch_out, S), out_dtype),
        grid_spec=pltpu.PrefetchScalarGridSpec(
            num_scalar_prefetch=0,
            grid=(N, n_s),
            in_specs=[_data_spec(ch_mid, ts), _data_spec(ch_out, ts),
                      _w_spec(c3c), _w_spec(A3), _w_spec(b3)],
            out_specs=_data_spec(ch_out, ts),
        ),
        compiler_params=_CPARAMS,
    )(t3, res, c3c, A3, b3)


# ---------------------------------------------------------------------------
# small helpers (shared by forward and reference)
# ---------------------------------------------------------------------------

def _fold_bn(bn_params, eps=1e-5):
    gamma, beta, mean, var = bn_params
    s = gamma / jnp.sqrt(var + eps)
    return s, beta - mean * s


def _conv3d(x, w, *, pad, precision=None, out_dtype=None):
    y = lax.conv_general_dilated(
        x, w.astype(x.dtype), window_strides=(1, 1, 1), padding=[(pad, pad)] * 3,
        dimension_numbers=("NCDHW", "OIDHW", "NCDHW"),
        preferred_element_type=jnp.float32, precision=precision)
    return y if out_dtype is None else y.astype(out_dtype)


def _se_gate(x_mean, p):
    z = jnp.maximum(jnp.dot(x_mean, p["fc1_w"].T, precision=_HP) + p["fc1_b"], 0.0)
    z = jnp.dot(z, p["fc2_w"].T, precision=_HP) + p["fc2_b"]
    return jax.nn.sigmoid(z)


# ---------------------------------------------------------------------------
# full forward pass
# ---------------------------------------------------------------------------

def bifusion_block_3d(g, x, p, *, ts_max=8192, vmem_data_budget=24 * 1024 * 1024,
                      inter_dtype=jnp.bfloat16):
    """BiFusionBlock3D forward (inference-mode BatchNorm), g/x: (N, C, D, H, W)."""
    N, ch_1, D, H, W = g.shape
    ch_2 = x.shape[1]
    S = D * H * W
    ch_int = p["wg_w"].shape[0]
    ch_out = p["c3_w"].shape[0]
    ch_mid = p["c1_w"].shape[0]
    inp = ch_1 + ch_2 + ch_int
    need_skip = inp != ch_out

    # ---- spatial (lane) tile selection --------------------------------------
    # Kernels are HBM / step-overhead bound at these channel counts, so take the
    # largest lane tile allowed by a v7x-safe VMEM budget for the heaviest (MID)
    # kernel's double-buffered streams.  No shrink-for-megacore: v5e/v6e have a
    # single TensorCore, and on v7x the batch grid axis feeds the second core.
    isz = jnp.dtype(inter_dtype).itemsize
    bytes_per_col = ((ch_1 + ch_2 + 1) * 4 * 2               # f32 streams (g, x, spc)
                     + (ch_int + ch_out + ch_mid) * isz * 2  # bf16 streams (in+out)
                     + inp * 4)                              # cat scratch (single buf)
    cap = max(512, vmem_data_budget // bytes_per_col)
    if S <= min(ts_max, cap):
        ts = S                                   # one full tile per batch element
    else:
        ts = max(512, (min(ts_max, cap) // 512) * 512)
    assert ts == S or ts % 128 == 0
    n_s = -(-S // ts)

    # channels-first with flattened spatial axis: free reshape, no transpose/pad.
    g3 = g.reshape(N, ch_1, S)
    x3 = x.reshape(N, ch_2, S)

    # ---- fold BN (+ conv bias) of W_g / W_x into channel affines -------------
    sg, tg = _fold_bn(p["wg_bn"])
    Ag = sg[:, None] * p["wg_w"]
    bg = (sg * p["wg_b"] + tg)[:, None]
    sx, tx = _fold_bn(p["wx_bn"])
    Ax = sx[:, None] * p["wx_w"]
    bx = (sx * p["wx_b"] + tx)[:, None]

    # ---- FRONT kernel: W_g(g)*W_x(x), ChannelPool3D(g), SE partial sums ------
    prod, pool, xpart = _pallas_front(g3, x3, Ag, bg, Ax, bx, ts, inter_dtype)

    # ---- SE channel gate (tiny (N, ch_2) problem; plain JAX) -----------------
    x_sum = xpart.reshape(N, ch_2, n_s, _LANE)[:, :, :, 0].sum(axis=2)
    se_gate = _se_gate(x_sum / S, p).reshape(N, ch_2, 1)

    # ---- spatial convolutions (XLA, bf16 operands, f32 accumulation) ---------
    # TODO(synk): 3x3x3 / 7x7x7 spatial Conv3d (self.W, self.spatial, residual.conv2)
    # are left to XLA (lax.conv_general_dilated); no halo-exchange Pallas conv, and
    # the NCDHW layout may induce XLA-internal transposes around them.
    sw, tw = _fold_bn(p["w_bn"])
    w_w = sw[:, None, None, None, None] * p["w_w"]          # BN scale into conv weight
    wbb = (sw * p["w_b"] + tw)[:, None]                     # BN shift + conv bias
    bpr = _conv3d(prod.reshape(N, ch_int, D, H, W), w_w, pad=1,
                  out_dtype=inter_dtype).reshape(N, ch_int, S)

    ssp, tsp = _fold_bn(p["sp_bn"])
    sp_w = ssp[:, None, None, None, None] * p["sp_w"]       # BN scale into conv weight
    spc = _conv3d(pool.reshape(N, 2, D, H, W), sp_w, pad=3).reshape(N, 1, S)
    tsp2 = tsp.reshape(1, 1)                                # BN shift applied in MID

    # ---- Residual3D weights ---------------------------------------------------
    s1, c1 = _fold_bn(p["bn1"])
    s2, c2 = _fold_bn(p["bn2"])
    if need_skip:
        wmat = jnp.concatenate([p["c1_w"], p["sk_w"]], axis=0)   # (ch_mid+ch_out, inp)
        bsk = p["sk_b"][:, None]
    else:
        wmat = p["c1_w"]
        bsk = None
    weights = (wmat, s1[:, None], c1[:, None], p["c1_b"][:, None],
               s2[:, None], c2[:, None], wbb, tsp2)

    # ---- MID kernel: gating + skip conv + bn1/relu/conv1/bn2/relu ------------
    res, t2 = _pallas_mid(g3, x3, se_gate, spc, bpr, weights, bsk,
                          ch_mid, ch_out, ts, inter_dtype)

    # ---- residual.conv2 (3x3x3, XLA; bn3 scale + conv2 bias folded) ----------
    s3, sh3 = _fold_bn(p["bn3"])
    c2_w = s3[:, None, None, None, None] * p["c2_w"]
    c3c = (s3 * p["c2_b"] + sh3)[:, None]
    t3 = _conv3d(t2.reshape(N, ch_mid, D, H, W), c2_w, pad=1,
                 out_dtype=inter_dtype).reshape(N, ch_mid, S)

    # ---- BACK kernel: bn3/relu/conv3 + residual add ---------------------------
    fuse = _pallas_back(t3, res, c3c, p["c3_w"], p["c3_b"][:, None], ts, g.dtype)

    # TODO(synk): Dropout3d skipped (module default drop_rate=0.0 -> identity).
    return fuse.reshape(N, ch_out, D, H, W)


# ---------------------------------------------------------------------------
# pure-JAX reference (mirrors the PyTorch forward, inference-mode BN, f32/HIGHEST)
# ---------------------------------------------------------------------------

def _reference(g, x, p):
    def bn(y, bnp):
        s, t = _fold_bn(bnp)
        shp = (1, -1) + (1,) * (y.ndim - 2)
        return y * s.reshape(shp) + t.reshape(shp)

    def c1x1(y, w, b):
        return (_conv3d(y, w[:, :, None, None, None], pad=0, precision=_HP)
                + b.reshape(1, -1, 1, 1, 1))

    relu = lambda v: jnp.maximum(v, 0.0)

    Wg = bn(c1x1(g, p["wg_w"], p["wg_b"]), p["wg_bn"])
    Wx = bn(c1x1(x, p["wx_w"], p["wx_b"]), p["wx_bn"])
    bp = relu(bn(_conv3d(Wg * Wx, p["w_w"], pad=1, precision=_HP)
                 + p["w_b"].reshape(1, -1, 1, 1, 1), p["w_bn"]))

    pool = jnp.concatenate([jnp.max(g, axis=1, keepdims=True),
                            jnp.mean(g, axis=1, keepdims=True)], axis=1)
    sp = bn(_conv3d(pool, p["sp_w"], pad=3, precision=_HP), p["sp_bn"])
    g_att = jax.nn.sigmoid(sp) * g

    gate = _se_gate(jnp.mean(x, axis=(2, 3, 4)), p)
    x_att = gate[:, :, None, None, None] * x

    cat = jnp.concatenate([g_att, x_att, bp], axis=1)
    ch_out = p["c3_w"].shape[0]
    residual = c1x1(cat, p["sk_w"], p["sk_b"]) if cat.shape[1] != ch_out else cat

    out = relu(bn(cat, p["bn1"]))
    out = c1x1(out, p["c1_w"], p["c1_b"])
    out = relu(bn(out, p["bn2"]))
    out = _conv3d(out, p["c2_w"], pad=1, precision=_HP) + p["c2_b"].reshape(1, -1, 1, 1, 1)
    out = relu(bn(out, p["bn3"]))
    out = c1x1(out, p["c3_w"], p["c3_b"])
    return out + residual


# ---------------------------------------------------------------------------
# deterministic synthetic parameters
# ---------------------------------------------------------------------------

def _make_params(key, ch_1, ch_2, r_2, ch_int, ch_out):
    ks = iter(jax.random.split(key, 64))

    def w(shape, s=0.1):
        return jax.random.normal(next(ks), shape, jnp.float32) * s

    def bn(c):
        return (1.0 + 0.1 * jax.random.normal(next(ks), (c,), jnp.float32),      # gamma
                0.05 * jax.random.normal(next(ks), (c,), jnp.float32),           # beta
                0.05 * jax.random.normal(next(ks), (c,), jnp.float32),           # running_mean
                1.0 + 0.1 * jnp.abs(jax.random.normal(next(ks), (c,), jnp.float32)))  # running_var

    inp = ch_1 + ch_2 + ch_int
    mid = ch_out // 2
    return dict(
        wg_w=w((ch_int, ch_1)), wg_b=w((ch_int,), 0.05), wg_bn=bn(ch_int),
        wx_w=w((ch_int, ch_2)), wx_b=w((ch_int,), 0.05), wx_bn=bn(ch_int),
        w_w=w((ch_int, ch_int, 3, 3, 3), 0.05), w_b=w((ch_int,), 0.05), w_bn=bn(ch_int),
        sp_w=w((1, 2, 7, 7, 7), 0.05), sp_bn=bn(1),
        fc1_w=w((ch_2 // r_2, ch_2)), fc1_b=w((ch_2 // r_2,), 0.05),
        fc2_w=w((ch_2, ch_2 // r_2)), fc2_b=w((ch_2,), 0.05),
        sk_w=w((ch_out, inp)), sk_b=w((ch_out,), 0.05),
        bn1=bn(inp),
        c1_w=w((mid, inp)), c1_b=w((mid,), 0.05),
        bn2=bn(mid),
        c2_w=w((mid, mid, 3, 3, 3), 0.05), c2_b=w((mid,), 0.05),
        bn3=bn(mid),
        c3_w=w((ch_out, mid)), c3_b=w((ch_out,), 0.05),
    )


if __name__ == "__main__":
    N, D, H, W = 2, 8, 8, 8
    ch_1, ch_2, r_2, ch_int, ch_out = 8, 8, 2, 16, 16

    key = jax.random.PRNGKey(0)
    kg, kx, kp = jax.random.split(key, 3)
    g = jax.random.normal(kg, (N, ch_1, D, H, W), dtype=jnp.float32)
    x = jax.random.normal(kx, (N, ch_2, D, H, W), dtype=jnp.float32)
    params = _make_params(kp, ch_1, ch_2, r_2, ch_int, ch_out)

    out = bifusion_block_3d(g, x, params)
    out = jax.block_until_ready(out)

    ref = _reference(g, x, params)
    assert out.shape == (N, ch_out, D, H, W)
    err = float(jnp.max(jnp.abs(out - ref)))
    # bf16 HBM intermediates + default-precision MXU vs. f32/HIGHEST reference
    assert jnp.allclose(out, ref, atol=2e-2, rtol=2e-2), f"max abs err {err}"
    print("KERNEL_OK")
</pallas_src>

<mosaic_0001>
module attributes {stable_mosaic.version = 11 : i64} {
  func.func @kernel(%arg0: i32, %arg1: i32, %arg2: memref<1x8x512xf32, #tpu.memory_space<vmem>>, %arg3: memref<1x8x512xf32, #tpu.memory_space<vmem>>, %arg4: memref<16x8xf32, #tpu.memory_space<vmem>>, %arg5: memref<16x1xf32, #tpu.memory_space<vmem>>, %arg6: memref<16x8xf32, #tpu.memory_space<vmem>>, %arg7: memref<16x1xf32, #tpu.memory_space<vmem>>, %arg8: memref<1x16x512xbf16, #tpu.memory_space<vmem>>, %arg9: memref<1x2x512xf32, #tpu.memory_space<vmem>>, %arg10: memref<1x8x128xf32, #tpu.memory_space<vmem>>) attributes {dimension_semantics = [#tpu.dimension_semantics<parallel>, #tpu.dimension_semantics<parallel>], iteration_bounds = array<i64: 2, 1>, scalar_prefetch = 0 : i64, scratch_operands = 0 : i64, tpu.core_type = #tpu.core_type<tc>, window_params = [{transform_indices = @transform_0, window_bounds = array<i64: 1, 8, 512>}, {transform_indices = @transform_1, window_bounds = array<i64: 1, 8, 512>}, {pipeline_mode = #tpu.pipeline_mode<synchronous>, transform_indices = @transform_2, window_bounds = array<i64: 16, 8>}, {pipeline_mode = #tpu.pipeline_mode<synchronous>, transform_indices = @transform_3, window_bounds = array<i64: 16, 1>}, {pipeline_mode = #tpu.pipeline_mode<synchronous>, transform_indices = @transform_4, window_bounds = array<i64: 16, 8>}, {pipeline_mode = #tpu.pipeline_mode<synchronous>, transform_indices = @transform_5, window_bounds = array<i64: 16, 1>}, {transform_indices = @transform_6, window_bounds = array<i64: 1, 16, 512>}, {transform_indices = @transform_7, window_bounds = array<i64: 1, 2, 512>}, {transform_indices = @transform_8, window_bounds = array<i64: 1, 8, 128>}]} {
    %c0 = arith.constant 0 : index
    %c0_0 = arith.constant 0 : index
    %c0_1 = arith.constant 0 : index
    %0 = vector.load %arg2[%c0, %c0_0, %c0_1] : memref<1x8x512xf32, #tpu.memory_space<vmem>>, vector<1x8x512xf32>
    %1 = vector.shape_cast %0 : vector<1x8x512xf32> to vector<8x512xf32>
    %c0_2 = arith.constant 0 : index
    %c0_3 = arith.constant 0 : index
    %c0_4 = arith.constant 0 : index
    %2 = vector.load %arg3[%c0_2, %c0_3, %c0_4] : memref<1x8x512xf32, #tpu.memory_space<vmem>>, vector<1x8x512xf32>
    %3 = vector.shape_cast %2 : vector<1x8x512xf32> to vector<8x512xf32>
    %c0_5 = arith.constant 0 : index
    %c0_6 = arith.constant 0 : index
    %4 = vector.load %arg4[%c0_5, %c0_6] : memref<16x8xf32, #tpu.memory_space<vmem>>, vector<16x8xf32>
    %cst = arith.constant dense<0.000000e+00> : vector<16x512xf32>
    %5 = tpu.matmul %4, %1, %cst {dimension_numbers = #tpu.dot_dimension_numbers<[1], [0], [0], [1], [0, 0, 1, 1], [], []>} : vector<16x8xf32>, vector<8x512xf32>, vector<16x512xf32> -> vector<16x512xf32>
    %c0_7 = arith.constant 0 : index
    %c0_8 = arith.constant 0 : index
    %6 = vector.load %arg5[%c0_7, %c0_8] : memref<16x1xf32, #tpu.memory_space<vmem>>, vector<16x1xf32>
    %7 = vector.broadcast %6 : vector<16x1xf32> to vector<16x512xf32>
    %8 = arith.addf %5, %7 : vector<16x512xf32>
    %c0_9 = arith.constant 0 : index
    %c0_10 = arith.constant 0 : index
    %9 = vector.load %arg6[%c0_9, %c0_10] : memref<16x8xf32, #tpu.memory_space<vmem>>, vector<16x8xf32>
    %cst_11 = arith.constant dense<0.000000e+00> : vector<16x512xf32>
    %10 = tpu.matmul %9, %3, %cst_11 {dimension_numbers = #tpu.dot_dimension_numbers<[1], [0], [0], [1], [0, 0, 1, 1], [], []>} : vector<16x8xf32>, vector<8x512xf32>, vector<16x512xf32> -> vector<16x512xf32>
    %c0_12 = arith.constant 0 : index
    %c0_13 = arith.constant 0 : index
    %11 = vector.load %arg7[%c0_12, %c0_13] : memref<16x1xf32, #tpu.memory_space<vmem>>, vector<16x1xf32>
    %12 = vector.broadcast %11 : vector<16x1xf32> to vector<16x512xf32>
    %13 = arith.addf %10, %12 : vector<16x512xf32>
    %14 = arith.mulf %8, %13 : vector<16x512xf32>
    %15 = arith.truncf %14 : vector<16x512xf32> to vector<16x512xbf16>
    %c0_14 = arith.constant 0 : index
    %c0_15 = arith.constant 0 : index
    %c0_16 = arith.constant 0 : index
    %16 = vector.load %arg8[%c0_14, %c0_15, %c0_16] : memref<1x16x512xbf16, #tpu.memory_space<vmem>>, vector<1x16x512xbf16>
    %17 = vector.shape_cast %16 : vector<1x16x512xbf16> to vector<16x512xbf16>
    %18 = vector.shape_cast %15 : vector<16x512xbf16> to vector<1x16x512xbf16>
    tpu.vector_store %arg8[%c0_14, %c0_15, %c0_16], %18 {strides = array<i32>} : memref<1x16x512xbf16, #tpu.memory_space<vmem>>, vector<1x16x512xbf16>,
    %cst_17 = arith.constant dense<0xFF800000> : vector<512xf32>
    %19 = vector.multi_reduction <maximumf>, %1, %cst_17 [0] : vector<8x512xf32> to vector<512xf32>
    %20 = vector.shape_cast %19 : vector<512xf32> to vector<1x512xf32>
    %cst_18 = arith.constant dense<0.000000e+00> : vector<512xf32>
    %21 = vector.multi_reduction <add>, %1, %cst_18 [0] : vector<8x512xf32> to vector<512xf32>
    %22 = vector.shape_cast %21 : vector<512xf32> to vector<1x512xf32>
    %cst_19 = arith.constant 8.000000e+00 : f32
    %23 = vector.broadcast %cst_19 : f32 to vector<1x512xf32>
    %24 = arith.divf %22, %23 : vector<1x512xf32>
    %25 = tpu.iota {dimensions = array<i32: 0>} : vector<2x512xi32>
    %c0_i32 = arith.constant 0 : i32
    %26 = vector.broadcast %c0_i32 : i32 to vector<2x512xi32>
    %27 = arith.cmpi eq, %25, %26 : vector<2x512xi32>
    %28 = vector.shape_cast %20 : vector<1x512xf32> to vector<1x512xf32>
    %29 = vector.broadcast %28 : vector<1x512xf32> to vector<2x512xf32>
    %30 = vector.shape_cast %24 : vector<1x512xf32> to vector<1x512xf32>
    %31 = vector.broadcast %30 : vector<1x512xf32> to vector<2x512xf32>
    %32 = arith.select %27, %29, %31 : vector<2x512xi1>, vector<2x512xf32>
    %c0_20 = arith.constant 0 : index
    %c0_21 = arith.constant 0 : index
    %c0_22 = arith.constant 0 : index
    %33 = vector.load %arg9[%c0_20, %c0_21, %c0_22] : memref<1x2x512xf32, #tpu.memory_space<vmem>>, vector<1x2x512xf32>
    %34 = vector.shape_cast %33 : vector<1x2x512xf32> to vector<2x512xf32>
    %35 = vector.shape_cast %32 : vector<2x512xf32> to vector<1x2x512xf32>
    tpu.vector_store %arg9[%c0_20, %c0_21, %c0_22], %35 {strides = array<i32>} : memref<1x2x512xf32, #tpu.memory_space<vmem>>, vector<1x2x512xf32>,
    %c512_i32 = arith.constant 512 : i32
    %36 = arith.muli %arg1, %c512_i32 : i32
    %37 = tpu.iota {dimensions = array<i32: 1>} : vector<8x512xi32>
    %38 = vector.broadcast %36 : i32 to vector<8x512xi32>
    %39 = arith.addi %38, %37 : vector<8x512xi32>
    %c512_i32_23 = arith.constant 512 : i32
    %40 = vector.broadcast %c512_i32_23 : i32 to vector<8x512xi32>
    %41 = arith.cmpi slt, %39, %40 : vector<8x512xi32>
    %cst_24 = arith.constant 0.000000e+00 : f32
    %42 = vector.broadcast %cst_24 : f32 to vector<8x512xf32>
    %43 = arith.select %41, %3, %42 : vector<8x512xi1>, vector<8x512xf32>
    %cst_25 = arith.constant dense<0.000000e+00> : vector<8xf32>
    %44 = vector.multi_reduction <add>, %43, %cst_25 [1] : vector<8x512xf32> to vector<8xf32>
    %45 = vector.shape_cast %44 : vector<8xf32> to vector<8x1xf32>
    %46 = vector.shape_cast %45 : vector<8x1xf32> to vector<8x1xf32>
    %47 = vector.broadcast %46 : vector<8x1xf32> to vector<8x128xf32>
    %c0_26 = arith.constant 0 : index
    %c0_27 = arith.constant 0 : index
    %c0_28 = arith.constant 0 : index
    %48 = vector.load %arg10[%c0_26, %c0_27, %c0_28] : memref<1x8x128xf32, #tpu.memory_space<vmem>>, vector<1x8x128xf32>
    %49 = vector.shape_cast %48 : vector<1x8x128xf32> to vector<8x128xf32>
    %50 = vector.shape_cast %47 : vector<8x128xf32> to vector<1x8x128xf32>
    tpu.vector_store %arg10[%c0_26, %c0_27, %c0_28], %50 {strides = array<i32>} : memref<1x8x128xf32, #tpu.memory_space<vmem>>, vector<1x8x128xf32>,
    return
  }
  func.func @transform_0(%arg0: i32, %arg1: i32) -> (i32, i32, i32) {
    %c0_i32 = arith.constant 0 : i32
    %c0_i32_0 = arith.constant 0 : i32
    return %arg0, %c0_i32, %arg1 : i32, i32, i32
  }
  func.func @transform_1(%arg0: i32, %arg1: i32) -> (i32, i32, i32) {
    %c0_i32 = arith.constant 0 : i32
    %c0_i32_0 = arith.constant 0 : i32
    return %arg0, %c0_i32, %arg1 : i32, i32, i32
  }
  func.func @transform_2(%arg0: i32, %arg1: i32) -> (i32, i32) {
    %c0_i32 = arith.constant 0 : i32
    %c0_i32_0 = arith.constant 0 : i32
    %c0_i32_1 = arith.constant 0 : i32
    return %c0_i32, %c0_i32_0 : i32, i32
  }
  func.func @transform_3(%arg0: i32, %arg1: i32) -> (i32, i32) {
    %c0_i32 = arith.constant 0 : i32
    %c0_i32_0 = arith.constant 0 : i32
    %c0_i32_1 = arith.constant 0 : i32
    return %c0_i32, %c0_i32_0 : i32, i32
  }
  func.func @transform_4(%arg0: i32, %arg1: i32) -> (i32, i32) {
    %c0_i32 = arith.constant 0 : i32
    %c0_i32_0 = arith.constant 0 : i32
    %c0_i32_1 = arith.constant 0 : i32
    return %c0_i32, %c0_i32_0 : i32, i32
  }
  func.func @transform_5(%arg0: i32, %arg1: i32) -> (i32, i32) {
    %c0_i32 = arith.constant 0 : i32
    %c0_i32_0 = arith.constant 0 : i32
    %c0_i32_1 = arith.constant 0 : i32
    return %c0_i32, %c0_i32_0 : i32, i32
  }
  func.func @transform_6(%arg0: i32, %arg1: i32) -> (i32, i32, i32) {
    %c0_i32 = arith.constant 0 : i32
    %c0_i32_0 = arith.constant 0 : i32
    return %arg0, %c0_i32, %arg1 : i32, i32, i32
  }
  func.func @transform_7(%arg0: i32, %arg1: i32) -> (i32, i32, i32) {
    %c0_i32 = arith.constant 0 : i32
    %c0_i32_0 = arith.constant 0 : i32
    return %arg0, %c0_i32, %arg1 : i32, i32, i32
  }
  func.func @transform_8(%arg0: i32, %arg1: i32) -> (i32, i32, i32) {
    %c0_i32 = arith.constant 0 : i32
    %c0_i32_0 = arith.constant 0 : i32
    return %arg0, %c0_i32, %arg1 : i32, i32, i32
  }
}

</mosaic_0001>

<llo_original>
// kernel: tpu_custom_call.1
$region0: #{tpu_custom_call.1}
  #allocation0 [shape = 'u32[]', space=smem, size = 0x4, offset = 0x4, fixed_abs, tag = 'smem constant byte address 0x4 - core index']
  #allocation1 [shape = 'u32[72,128]{1,0:T(1,128)}', space=vmem, size = 0x9000, scoped, tag = 'internal scratch']
  %s0 = inlined_call_operand.hbm [shape: f32[2,8,512], index: 0, kind: input, shape index: {}]
  %s1 = inlined_call_operand.hbm [shape: f32[2,8,512], index: 1, kind: input, shape index: {}]
  %s2 = inlined_call_operand.vmem [shape: f32[16,8], index: 2, kind: input, shape index: {}]
  %s3 = inlined_call_operand.vmem [shape: f32[16,1], index: 3, kind: input, shape index: {}]
  %s4 = inlined_call_operand.vmem [shape: f32[16,8], index: 4, kind: input, shape index: {}]
  %s5 = inlined_call_operand.vmem [shape: f32[16,1], index: 5, kind: input, shape index: {}]
  %s6 = inlined_call_operand.hbm [shape: bf16[2,16,512], index: 6, kind: output, shape index: {0}]
  %s7 = inlined_call_operand.hbm [shape: f32[2,2,512], index: 7, kind: output, shape index: {1}]
  %s8 = inlined_call_operand.hbm [shape: f32[2,8,128], index: 8, kind: output, shape index: {2}]
  %9 = xla_tuple %s6, %s7, %s8
  %s10 = sld [smem:[#allocation0]]
  $region81: #{tpu_custom_call.1} parent=0
    _
  %s12 = ssub.s32 1, %s10
  %s13 = scalar_select 0, %s12, %s10
  $region1: #{tpu_custom_call.1} parent=0
    #allocation2 [shape = 'u8[32768]{0}', space=vmem, size = 0x8000, scoped, tag = 'input window, operand 0']
    #allocation3 [shape = 's32[2]{0}', space=sflag, size = 0x8, scoped, tag = 'scoped memory for tpu_custom_call.1']
    #allocation4 [shape = 's32[2]{0}', space=sflag, size = 0x8, scoped, tag = 'scoped memory for tpu_custom_call.1']
    #allocation5 [shape = 'u8[32768]{0}', space=vmem, size = 0x8000, scoped, tag = 'input window, operand 1']
    #allocation6 [shape = 's32[2]{0}', space=sflag, size = 0x8, scoped, tag = 'scoped memory for tpu_custom_call.1']
    #allocation7 [shape = 'u8[32768]{0}', space=vmem, size = 0x8000, scoped, tag = 'output window, operand 0']
    #allocation8 [shape = 'u8[8192]{0}', space=vmem, size = 0x2000, scoped, tag = 'output window, operand 1']
    #allocation9 [shape = 's32[2]{0}', space=sflag, size = 0x8, scoped, tag = 'scoped memory for tpu_custom_call.1']
    #allocation10 [shape = 'u8[8192]{0}', space=vmem, size = 0x2000, scoped, tag = 'output window, operand 2']
    %14 = vsyncpa [#allocation3], 0
    %s15 = scalar_lea.sflag [#allocation3], 1
    %16 = vsyncpa %s15, 0
    %17 = vsyncpa [#allocation6], 0
    %s18 = scalar_lea.sflag [#allocation6], 1
    %19 = vsyncpa %s18, 0
    %20 = vsyncpa [#allocation4], 0
    %s21 = scalar_lea.sflag [#allocation4], 1
    %22 = vsyncpa %s21, 0
    %23 = vsyncpa [#allocation9], 0
    %s24 = scalar_lea.sflag [#allocation9], 1
    %25 = vsyncpa %s24, 0
    loop: start=0, step=1, limit=4
    $region2: #{tpu_custom_call.1} parent=1 // loop_pre_header
      _
    $region3: #{tpu_custom_call.1} parent=1 // loop_header
      %s27 = sphi 0, %s31
      %p28 = scmp.ge.s32.totalorder %s27, 4
      %s34 = sphi 0, %s46
      %s35 = sphi 0, %s42
      %s36 = sphi 0, %s34
      %s37 = sphi 0, %s35
      %s38 = sphi 0, %s36
      %s39 = sphi 0, %s37
      %s51 = sphi 0, %s53
      %s54 = sphi 0, %s51
      %s55 = sphi 0, %s54
      %s71 = sphi 0, %s55
      %s79 = sphi 0, %s81
      %s82 = sphi 0, %s79
      %s83 = sphi 0, %s82
      %s99 = sphi 0, %s83
      %s103 = sphi 0, %s103
      %s105 = sphi 0, %s103
      %s106 = sphi 0, %s105
      %s120 = sphi 0, %s106
      %s124 = sphi 0, %s124
      %s126 = sphi 0, %s124
      %s127 = sphi 0, %s126
      %s141 = sphi 0, %s127
      %s145 = sphi 0, %s145
      %s147 = sphi 0, %s145
      %s148 = sphi 0, %s147
      %s162 = sphi 0, %s148
      %s166 = sphi 0, %s166
      %s168 = sphi 0, %s166
      %s169 = sphi 0, %s168
      %s183 = sphi 0, %s169
      %s191 = sphi 0, %s193
      %s194 = sphi 0, %s191
      %s195 = sphi 0, %s194
      %s211 = sphi 0, %s195
      %s219 = sphi 0, %s221
      %s222 = sphi 0, %s219
      %s223 = sphi 0, %s222
      %s239 = sphi 0, %s223
      %s247 = sphi 0, %s249
      %s250 = sphi 0, %s247
      %s251 = sphi 0, %s250
      %s267 = sphi 0, %s251
    $region4: #{tpu_custom_call.1} parent=1 // loop_header_branch
      %30 = sbr.rel (%p28) target = $region8
    $region5: #{tpu_custom_call.1} parent=1 // loop_body
      %s32 = ssub.s32 %s27, 1
      %s33 = ssub.s32 %s27, 2
      %s40 = sadd.s32 1, %s35
      %p41 = scmp.ge.s32.totalorder %s40, 1
      %s42 = scalar_select %p41, 0, %s40
      %s43 = sadd.s32 1, %s34
      %s44 = scalar_select %p41, %s43, %s34
      %p45 = scmp.ge.s32.totalorder %s44, 2
      %s46 = scalar_select %p45, 0, %s44
      %s47 = ssub.s32 %s34, %s46
      %s48 = ssub.s32 %s35, %s42
      %s49 = sor.u32 %s47, %s48
      %p50 = scmp.eq.s32.totalorder %s49, 0
      %s52 = sadd.s32 %s51, 1
      %s53 = scalar_select %p50, %s51, %s52
      %p56 = pneg %p50
      %p57 = scmp.eq.s32.totalorder %s27, 1
      %p58 = por %p56, %p57
      %p59 = scmp.ne.s32.totalorder %s51, %s54
      %p60 = scmp.eq.s32.totalorder %s27, 0
      %p61 = por %p59, %p60
      %p62 = scmp.ne.s32.totalorder %s51, %s54
      %p63 = scmp.eq.s32.totalorder %s32, 1
      %p64 = por %p62, %p63
      %p65 = scmp.ne.s32.totalorder %s54, %s55
      %p66 = scmp.eq.s32.totalorder %s32, 0
      %p67 = por %p65, %p66
      %p68 = scmp.ne.s32.totalorder %s54, %s55
      %p69 = scmp.eq.s32.totalorder %s33, 1
      %p70 = por %p68, %p69
      %p72 = scmp.ne.s32.totalorder %s55, %s71
      %p73 = scmp.eq.s32.totalorder %s33, 0
      %p74 = por %p72, %p73
      %s75 = ssub.s32 %s34, %s46
      %s76 = ssub.s32 %s35, %s42
      %s77 = sor.u32 %s75, %s76
      %p78 = scmp.eq.s32.totalorder %s77, 0
      %s80 = sadd.s32 %s79, 1
      %s81 = scalar_select %p78, %s79, %s80
      %p84 = pneg %p78
      %p85 = scmp.eq.s32.totalorder %s27, 1
      %p86 = por %p84, %p85
      %p87 = scmp.ne.s32.totalorder %s79, %s82
      %p88 = scmp.eq.s32.totalorder %s27, 0
      %p89 = por %p87, %p88
      %p90 = scmp.ne.s32.totalorder %s79, %s82
      %p91 = scmp.eq.s32.totalorder %s32, 1
      %p92 = por %p90, %p91
      %p93 = scmp.ne.s32.totalorder %s82, %s83
      %p94 = scmp.eq.s32.totalorder %s32, 0
      %p95 = por %p93, %p94
      %p96 = scmp.ne.s32.totalorder %s82, %s83
      %p97 = scmp.eq.s32.totalorder %s33, 1
      %p98 = por %p96, %p97
      %p100 = scmp.ne.s32.totalorder %s83, %s99
      %p101 = scmp.eq.s32.totalorder %s33, 0
      %p102 = por %p100, %p101
      %s104 = sadd.s32 %s103, 1
      %p107 = scmp.eq.s32.totalorder %s27, 1
      %p108 = scmp.ne.s32.totalorder %s103, %s105
      %p109 = scmp.eq.s32.totalorder %s27, 0
      %p110 = por %p108, %p109
      %p111 = scmp.ne.s32.totalorder %s103, %s105
      %p112 = scmp.eq.s32.totalorder %s32, 1
      %p113 = por %p111, %p112
      %p114 = scmp.ne.s32.totalorder %s105, %s106
      %p115 = scmp.eq.s32.totalorder %s32, 0
      %p116 = por %p114, %p115
      %p117 = scmp.ne.s32.totalorder %s105, %s106
      %p118 = scmp.eq.s32.totalorder %s33, 1
      %p119 = por %p117, %p118
      %p121 = scmp.ne.s32.totalorder %s106, %s120
      %p122 = scmp.eq.s32.totalorder %s33, 0
      %p123 = por %p121, %p122
      %s125 = sadd.s32 %s124, 1
      %p128 = scmp.eq.s32.totalorder %s27, 1
      %p129 = scmp.ne.s32.totalorder %s124, %s126
      %p130 = scmp.eq.s32.totalorder %s27, 0
      %p131 = por %p129, %p130
      %p132 = scmp.ne.s32.totalorder %s124, %s126
      %p133 = scmp.eq.s32.totalorder %s32, 1
      %p134 = por %p132, %p133
      %p135 = scmp.ne.s32.totalorder %s126, %s127
      %p136 = scmp.eq.s32.totalorder %s32, 0
      %p137 = por %p135, %p136
      %p138 = scmp.ne.s32.totalorder %s126, %s127
      %p139 = scmp.eq.s32.totalorder %s33, 1
      %p140 = por %p138, %p139
      %p142 = scmp.ne.s32.totalorder %s127, %s141
      %p143 = scmp.eq.s32.totalorder %s33, 0
      %p144 = por %p142, %p143
      %s146 = sadd.s32 %s145, 1
      %p149 = scmp.eq.s32.totalorder %s27, 1
      %p150 = scmp.ne.s32.totalorder %s145, %s147
      %p151 = scmp.eq.s32.totalorder %s27, 0
      %p152 = por %p150, %p151
      %p153 = scmp.ne.s32.totalorder %s145, %s147
      %p154 = scmp.eq.s32.totalorder %s32, 1
      %p155 = por %p153, %p154
      %p156 = scmp.ne.s32.totalorder %s147, %s148
      %p157 = scmp.eq.s32.totalorder %s32, 0
      %p158 = por %p156, %p157
      %p159 = scmp.ne.s32.totalorder %s147, %s148
      %p160 = scmp.eq.s32.totalorder %s33, 1
      %p161 = por %p159, %p160
      %p163 = scmp.ne.s32.totalorder %s148, %s162
      %p164 = scmp.eq.s32.totalorder %s33, 0
      %p165 = por %p163, %p164
      %s167 = sadd.s32 %s166, 1
      %p170 = scmp.eq.s32.totalorder %s27, 1
      %p171 = scmp.ne.s32.totalorder %s166, %s168
      %p172 = scmp.eq.s32.totalorder %s27, 0
      %p173 = por %p171, %p172
      %p174 = scmp.ne.s32.totalorder %s166, %s168
      %p175 = scmp.eq.s32.totalorder %s32, 1
      %p176 = por %p174, %p175
      %p177 = scmp.ne.s32.totalorder %s168, %s169
      %p178 = scmp.eq.s32.totalorder %s32, 0
      %p179 = por %p177, %p178
      %p180 = scmp.ne.s32.totalorder %s168, %s169
      %p181 = scmp.eq.s32.totalorder %s33, 1
      %p182 = por %p180, %p181
      %p184 = scmp.ne.s32.totalorder %s169, %s183
      %p185 = scmp.eq.s32.totalorder %s33, 0
      %p186 = por %p184, %p185
      %s187 = ssub.s32 %s34, %s46
      %s188 = ssub.s32 %s35, %s42
      %s189 = sor.u32 %s187, %s188
      %p190 = scmp.eq.s32.totalorder %s189, 0
      %s192 = sadd.s32 %s191, 1
      %s193 = scalar_select %p190, %s191, %s192
      %p196 = pneg %p190
      %p197 = scmp.eq.s32.totalorder %s27, 1
      %p198 = por %p196, %p197
      %p199 = scmp.ne.s32.totalorder %s191, %s194
      %p200 = scmp.eq.s32.totalorder %s27, 0
      %p201 = por %p199, %p200
      %p202 = scmp.ne.s32.totalorder %s191, %s194
      %p203 = scmp.eq.s32.totalorder %s32, 1
      %p204 = por %p202, %p203
      %p205 = scmp.ne.s32.totalorder %s194, %s195
      %p206 = scmp.eq.s32.totalorder %s32, 0
      %p207 = por %p205, %p206
      %p208 = scmp.ne.s32.totalorder %s194, %s195
      %p209 = scmp.eq.s32.totalorder %s33, 1
      %p210 = por %p208, %p209
      %p212 = scmp.ne.s32.totalorder %s195, %s211
      %p213 = scmp.eq.s32.totalorder %s33, 0
      %p214 = por %p212, %p213
      %s215 = ssub.s32 %s34, %s46
      %s216 = ssub.s32 %s35, %s42
      %s217 = sor.u32 %s215, %s216
      %p218 = scmp.eq.s32.totalorder %s217, 0
      %s220 = sadd.s32 %s219, 1
      %s221 = scalar_select %p218, %s219, %s220
      %p224 = pneg %p218
      %p225 = scmp.eq.s32.totalorder %s27, 1
      %p226 = por %p224, %p225
      %p227 = scmp.ne.s32.totalorder %s219, %s222
      %p228 = scmp.eq.s32.totalorder %s27, 0
      %p229 = por %p227, %p228
      %p230 = scmp.ne.s32.totalorder %s219, %s222
      %p231 = scmp.eq.s32.totalorder %s32, 1
      %p232 = por %p230, %p231
      %p233 = scmp.ne.s32.totalorder %s222, %s223
      %p234 = scmp.eq.s32.totalorder %s32, 0
      %p235 = por %p233, %p234
      %p236 = scmp.ne.s32.totalorder %s222, %s223
      %p237 = scmp.eq.s32.totalorder %s33, 1
      %p238 = por %p236, %p237
      %p240 = scmp.ne.s32.totalorder %s223, %s239
      %p241 = scmp.eq.s32.totalorder %s33, 0
      %p242 = por %p240, %p241
      %s243 = ssub.s32 %s34, %s46
      %s244 = ssub.s32 %s35, %s42
      %s245 = sor.u32 %s243, %s244
      %p246 = scmp.eq.s32.totalorder %s245, 0
      %s248 = sadd.s32 %s247, 1
      %s249 = scalar_select %p246, %s247, %s248
      %p252 = pneg %p246
      %p253 = scmp.eq.s32.totalorder %s27, 1
      %p254 = por %p252, %p253
      %p255 = scmp.ne.s32.totalorder %s247, %s250
      %p256 = scmp.eq.s32.totalorder %s27, 0
      %p257 = por %p255, %p256
      %p258 = scmp.ne.s32.totalorder %s247, %s250
      %p259 = scmp.eq.s32.totalorder %s32, 1
      %p260 = por %p258, %p259
      %p261 = scmp.ne.s32.totalorder %s250, %s251
      %p262 = scmp.eq.s32.totalorder %s32, 0
      %p263 = por %p261, %p262
      %p264 = scmp.ne.s32.totalorder %s250, %s251
      %p265 = scmp.eq.s32.totalorder %s33, 1
      %p266 = por %p264, %p265
      %p268 = scmp.ne.s32.totalorder %s251, %s267
      %p269 = scmp.eq.s32.totalorder %s33, 0
      %p270 = por %p268, %p269
      %p271 = scmp.le.s32.totalorder 1, %s27
      %p272 = scmp.lt.s32.totalorder %s27, 3
      %p273 = pnand %p271, %p272
      %p274 = pneg %p273
      // Predicated region
      $region9: #{tpu_custom_call.1} parent=5 // pred_check
        _
      $region10: #{tpu_custom_call.1} parent=5 // pred_check_branch
        %276 = sbr.rel (%p273) target = $region12
      $region11: #{tpu_custom_call.1} parent=5 // pred_region
        %s277 = ssub.s32 %s27, 1
        // Predicated region
        $region13: #{tpu_custom_call.1} parent=11 // pred_check
          %p278 = pneg %p116
        $region14: #{tpu_custom_call.1} parent=11 // pred_check_branch
          %280 = sbr.rel (%p278) target = $region16
        $region15: #{tpu_custom_call.1} parent=11 // pred_region
          _
        $region16: #{tpu_custom_call.1} parent=11 // pred_fallthru
          _
        // Predicated region
        $region17: #{tpu_custom_call.1} parent=11 // pred_check
          %p281 = pneg %p137
        $region18: #{tpu_custom_call.1} parent=11 // pred_check_branch
          %283 = sbr.rel (%p281) target = $region20
        $region19: #{tpu_custom_call.1} parent=11 // pred_region
          _
        $region20: #{tpu_custom_call.1} parent=11 // pred_fallthru
          _
        // Predicated region
        $region21: #{tpu_custom_call.1} parent=11 // pred_check
          %p284 = pneg %p158
        $region22: #{tpu_custom_call.1} parent=11 // pred_check_branch
          %286 = sbr.rel (%p284) target = $region24
        $region23: #{tpu_custom_call.1} parent=11 // pred_region
          _
        $region24: #{tpu_custom_call.1} parent=11 // pred_fallthru
          _
        // Predicated region
        $region25: #{tpu_custom_call.1} parent=11 // pred_check
          %p287 = pneg %p179
        $region26: #{tpu_custom_call.1} parent=11 // pred_check_branch
          %289 = sbr.rel (%p287) target = $region28
        $region27: #{tpu_custom_call.1} parent=11 // pred_region
          _
        $region28: #{tpu_custom_call.1} parent=11 // pred_fallthru
          _
      $region12: #{tpu_custom_call.1} parent=5 // pred_fallthru
        _
      %p290 = scmp.lt.s32.totalorder %s27, 2
      // Predicated region
      $region29: #{tpu_custom_call.1} parent=5 // pred_check
        %p291 = pneg %p290
      $region30: #{tpu_custom_call.1} parent=5 // pred_check_branch
        %293 = sbr.rel (%p291) target = $region32
      $region31: #{tpu_custom_call.1} parent=5 // pred_region
        // Predicated region
        $region33: #{tpu_custom_call.1} parent=31 // pred_check
          %p294 = pneg %p61
        $region34: #{tpu_custom_call.1} parent=31 // pred_check_branch
          %296 = sbr.rel (%p294) target = $region36
        $region35: #{tpu_custom_call.1} parent=31 // pred_region
          %s297 = sand.u32 %s51, 1
          %s298 = scalar_lea.sflag [#allocation3], %s297
          %s299 = sand.u32 %s51, 1
          %s300 = smul.addr %s299, 32
          %s301 = scalar_lea.vmem [#allocation2], %s300
          %s302 = smul.u32 4, %s35
          %304 = vsyncadd %s298, 0
          %s305 = smul.addr %s34, 4
          %s306 = sadd.s32 %s302, %s305
          %s307 = smul.addr %s306, 8
          %s308 = scalar_lea.hbm %s0, %s307
          %s310 = sshll.u32 %s308, 4
          %s311 = int_to_ptr.hbm [resolvable:$true] %s310
          %s312 = sshll.u32 %s301, 4
          %s313 = int_to_ptr.vmem [resolvable:$true] %s312
          %315 = dma.hbm_to_vmem [thread:$0]  %s311, 512, %s313, %s298
        $region36: #{tpu_custom_call.1} parent=31 // pred_fallthru
          _
        // Predicated region
        $region37: #{tpu_custom_call.1} parent=31 // pred_check
          %p316 = pneg %p89
        $region38: #{tpu_custom_call.1} parent=31 // pred_check_branch
          %318 = sbr.rel (%p316) target = $region40
        $region39: #{tpu_custom_call.1} parent=31 // pred_region
          %s319 = sand.u32 %s79, 1
          %s320 = scalar_lea.sflag [#allocation6], %s319
          %s321 = sand.u32 %s79, 1
          %s322 = smul.addr %s321, 32
          %s323 = scalar_lea.vmem [#allocation5], %s322
          %s324 = smul.u32 4, %s35
          %326 = vsyncadd %s320, 0
          %s327 = smul.addr %s34, 4
          %s328 = sadd.s32 %s324, %s327
          %s329 = smul.addr %s328, 8
          %s330 = scalar_lea.hbm %s1, %s329
          %s332 = sshll.u32 %s330, 4
          %s333 = int_to_ptr.hbm [resolvable:$true] %s332
          %s334 = sshll.u32 %s323, 4
          %s335 = int_to_ptr.vmem [resolvable:$true] %s334
          %337 = dma.hbm_to_vmem [thread:$0]  %s333, 512, %s335, %s320
        $region40: #{tpu_custom_call.1} parent=31 // pred_fallthru
          _
      $region32: #{tpu_custom_call.1} parent=5 // pred_fallthru
        _
      %p338 = scmp.le.s32.totalorder 1, %s27
      %p339 = scmp.lt.s32.totalorder %s27, 3
      %p340 = pnand %p338, %p339
      %p341 = pneg %p340
      // Predicated region
      $region41: #{tpu_custom_call.1} parent=5 // pred_check
        _
      $region42: #{tpu_custom_call.1} parent=5 // pred_check_branch
        %343 = sbr.rel (%p340) target = $region44
      $region43: #{tpu_custom_call.1} parent=5 // pred_region
        %s344 = ssub.s32 %s27, 1
        %s345 = sand.u32 %s54, 1
        %s346 = scalar_lea.sflag [#allocation3], %s345
        %s347 = sand.u32 %s54, 1
        %s348 = smul.addr %s347, 32
        %s349 = scalar_lea.vmem [#allocation2], %s348
        // Predicated region
        $region45: #{tpu_custom_call.1} parent=43 // pred_check
          %p350 = pneg %p67
        $region46: #{tpu_custom_call.1} parent=43 // pred_check_branch
          %352 = sbr.rel (%p350) target = $region48
        $region47: #{tpu_custom_call.1} parent=43 // pred_region
          %354 = dma.done %s346, 512
        $region48: #{tpu_custom_call.1} parent=43 // pred_fallthru
          _
        %s355 = sand.u32 %s82, 1
        %s356 = scalar_lea.sflag [#allocation6], %s355
        %s357 = sand.u32 %s82, 1
        %s358 = smul.addr %s357, 32
        %s359 = scalar_lea.vmem [#allocation5], %s358
        // Predicated region
        $region49: #{tpu_custom_call.1} parent=43 // pred_check
          %p360 = pneg %p95
        $region50: #{tpu_custom_call.1} parent=43 // pred_check_branch
          %362 = sbr.rel (%p360) target = $region52
        $region51: #{tpu_custom_call.1} parent=43 // pred_region
          %364 = dma.done %s356, 512
        $region52: #{tpu_custom_call.1} parent=43 // pred_fallthru
          _
        %s365 = sand.u32 %s54, 1
        %s366 = scalar_lea.sflag [#allocation3], %s365
        %s367 = sand.u32 %s54, 1
        %s368 = smul.addr %s367, 32
        %s369 = scalar_lea.vmem [#allocation2], %s368
        %p370 = pneg %p67
        %p371 = pneg %p64
        %s372 = sand.u32 %s82, 1
        %s373 = scalar_lea.sflag [#allocation6], %s372
        %s374 = sand.u32 %s82, 1
        %s375 = smul.addr %s374, 32
        %s376 = scalar_lea.vmem [#allocation5], %s375
        %p377 = pneg %p95
        %p378 = pneg %p92
        %p379 = pneg %p116
        %p380 = pneg %p113
        %p381 = pneg %p137
        %p382 = pneg %p134
        %p383 = pneg %p158
        %p384 = pneg %p155
        %p385 = pneg %p179
        %p386 = pneg %p176
        %p387 = pneg %p207
        %p388 = pneg %p204
        %s389 = sand.u32 %s194, 1
        %s390 = scalar_lea.sflag [#allocation4], %s389
        %s391 = sand.u32 %s194, 1
        %s392 = smul.addr %s391, 32
        %s393 = scalar_lea.vmem [#allocation7], %s392
        %p394 = pneg %p235
        %p395 = pneg %p232
        %s396 = sand.u32 %s32, 1
        %s397 = scalar_lea.sflag [#allocation9], %s396
        %s398 = sand.u32 %s222, 1
        %s399 = smul.addr %s398, 8
        %s400 = scalar_lea.vmem [#allocation8], %s399
        %p401 = pneg %p263
        %p402 = pneg %p260
        %s403 = sand.u32 %s32, 1
        %s404 = scalar_lea.sflag [#allocation9], %s403
        %s405 = sand.u32 %s250, 1
        %s406 = smul.addr %s405, 8
        %s407 = scalar_lea.vmem [#allocation10], %s406
        %s408 = smul.u32 4, %s37
        %s409 = smul.u32 4, %s37
        %s410 = smul.u32 4, %s37
        %s411 = smul.u32 4, %s37
        %v412 = vld [vmem:[%s349] sm:$0xff]
        %v413 = vld [vmem:[%s349 + $0x8] sm:$0xff]
        %v414 = vld [vmem:[%s349 + $0x10] sm:$0xff]
        %v415 = vld [vmem:[%s349 + $0x18] sm:$0xff]
        %v416 = vld [vmem:[%s359] sm:$0xff]
        %v417 = vld [vmem:[%s359 + $0x8] sm:$0xff]
        %v418 = vld [vmem:[%s359 + $0x10] sm:$0xff]
        %v419 = vld [vmem:[%s359 + $0x18] sm:$0xff]
        %v420 = vld [vmem:[%s2] sm:$0xff]
        %v421 = vld [vmem:[%s2 + $0x8] sm:$0xff]
        %v422 = vld [vmem:[%s3] sm:$0xff]
        %v423 = vld [vmem:[%s3 + $0x8] sm:$0xff]
        %425 = vset.pattern.permute.xlu0 0
        %426 = vperm.xlu0 %425, %v422
        %v427 = vpop.permute.xlu0 %426
        %430 = vset.pattern.permute.xlu0 0
        %431 = vperm.xlu0 %430, %v423
        %v432 = vpop.permute.xlu0 %431
        %vm434 = vcmask 64512
        %v436 = vsel %vm434, %v420, 0
        %v439 = vsel %vm434, %v421, 0
        %441 = vmatpush.msra.mxu0 0.0
        %442 = vmatpush.msra.mxu0 0.0
        %443 = vmatpush.msra.mxu0 0.0
        %444 = vmatpush.msra.mxu0 0.0
        %445 = vmatpush.msra.mxu0 0.0
        %446 = vmatpush.msra.mxu0 0.0
        %447 = vmatpush.msra.mxu0 0.0
        %448 = vmatpush.msra.mxu0 0.0
        %449 = vmatpush.msra.mxu0 0.0
        %450 = vmatpush.msra.mxu0 0.0
        %451 = vmatpush.msra.mxu0 0.0
        %452 = vmatpush.msra.mxu0 0.0
        %453 = vmatpush.msra.mxu0 0.0
        %454 = vmatpush.msra.mxu0 0.0
        %455 = vmatpush.msra.mxu0 0.0
        %456 = vmatpush.msra.mxu0 %v412
        %457 = vmatmul.f32.gmra.mxu0 %v436
        %v458 = vpop.f32.mrf.mxu0
        %v459 = vadd.f32 %v427, %v458
        %460 = vmatmul.f32.gmra.mxu0 %v439
        %v461 = vpop.f32.mrf.mxu0
        %v462 = vadd.f32 %v432, %v461
        %463 = vdwg.mxu0
        %464 = vmatpush.msra.mxu0 0.0
        %465 = vmatpush.msra.mxu0 0.0
        %466 = vmatpush.msra.mxu0 0.0
        %467 = vmatpush.msra.mxu0 0.0
        %468 = vmatpush.msra.mxu0 0.0
        %469 = vmatpush.msra.mxu0 0.0
        %470 = vmatpush.msra.mxu0 0.0
        %471 = vmatpush.msra.mxu0 0.0
        %472 = vmatpush.msra.mxu0 0.0
        %473 = vmatpush.msra.mxu0 0.0
        %474 = vmatpush.msra.mxu0 0.0
        %475 = vmatpush.msra.mxu0 0.0
        %476 = vmatpush.msra.mxu0 0.0
        %477 = vmatpush.msra.mxu0 0.0
        %478 = vmatpush.msra.mxu0 0.0
        %479 = vmatpush.msra.mxu0 %v413
        %480 = vmatmul.f32.gmra.mxu0 %v436
        %v481 = vpop.f32.mrf.mxu0
        %v482 = vadd.f32 %v427, %v481
        %483 = vmatmul.f32.gmra.mxu0 %v439
        %v484 = vpop.f32.mrf.mxu0
        %v485 = vadd.f32 %v432, %v484
        %486 = vdwg.mxu0
        %487 = vmatpush.msra.mxu0 0.0
        %488 = vmatpush.msra.mxu0 0.0
        %489 = vmatpush.msra.mxu0 0.0
        %490 = vmatpush.msra.mxu0 0.0
        %491 = vmatpush.msra.mxu0 0.0
        %492 = vmatpush.msra.mxu0 0.0
        %493 = vmatpush.msra.mxu0 0.0
        %494 = vmatpush.msra.mxu0 0.0
        %495 = vmatpush.msra.mxu0 0.0
        %496 = vmatpush.msra.mxu0 0.0
        %497 = vmatpush.msra.mxu0 0.0
        %498 = vmatpush.msra.mxu0 0.0
        %499 = vmatpush.msra.mxu0 0.0
        %500 = vmatpush.msra.mxu0 0.0
        %501 = vmatpush.msra.mxu0 0.0
        %502 = vmatpush.msra.mxu0 %v414
        %503 = vmatmul.f32.gmra.mxu0 %v436
        %v504 = vpop.f32.mrf.mxu0
        %v505 = vadd.f32 %v427, %v504
        %506 = vmatmul.f32.gmra.mxu0 %v439
        %v507 = vpop.f32.mrf.mxu0
        %v508 = vadd.f32 %v432, %v507
        %509 = vdwg.mxu0
        %510 = vmatpush.msra.mxu0 0.0
        %511 = vmatpush.msra.mxu0 0.0
        %512 = vmatpush.msra.mxu0 0.0
        %513 = vmatpush.msra.mxu0 0.0
        %514 = vmatpush.msra.mxu0 0.0
        %515 = vmatpush.msra.mxu0 0.0
        %516 = vmatpush.msra.mxu0 0.0
        %517 = vmatpush.msra.mxu0 0.0
        %518 = vmatpush.msra.mxu0 0.0
        %519 = vmatpush.msra.mxu0 0.0
        %520 = vmatpush.msra.mxu0 0.0
        %521 = vmatpush.msra.mxu0 0.0
        %522 = vmatpush.msra.mxu0 0.0
        %523 = vmatpush.msra.mxu0 0.0
        %524 = vmatpush.msra.mxu0 0.0
        %525 = vmatpush.msra.mxu0 %v415
        %526 = vmatmul.f32.gmra.mxu0 %v436
        %v527 = vpop.f32.mrf.mxu0
        %v528 = vadd.f32 %v427, %v527
        %529 = vmatmul.f32.gmra.mxu0 %v439
        %v530 = vpop.f32.mrf.mxu0
        %v531 = vadd.f32 %v432, %v530
        %532 = vdwg.mxu0
        %v533 = vld [vmem:[%s4] sm:$0xff]
        %v534 = vld [vmem:[%s4 + $0x8] sm:$0xff]
        %v535 = vld [vmem:[%s5] sm:$0xff]
        %v536 = vld [vmem:[%s5 + $0x8] sm:$0xff]
        %538 = vset.pattern.permute.xlu0 0
        %539 = vperm.xlu0 %538, %v535
        %v540 = vpop.permute.xlu0 %539
        %543 = vset.pattern.permute.xlu0 0
        %544 = vperm.xlu0 %543, %v536
        %v545 = vpop.permute.xlu0 %544
        %v548 = vsel %vm434, %v533, 0
        %v551 = vsel %vm434, %v534, 0
        %553 = vmatpush.msra.mxu0 0.0
        %554 = vmatpush.msra.mxu0 0.0
        %555 = vmatpush.msra.mxu0 0.0
        %556 = vmatpush.msra.mxu0 0.0
        %557 = vmatpush.msra.mxu0 0.0
        %558 = vmatpush.msra.mxu0 0.0
        %559 = vmatpush.msra.mxu0 0.0
        %560 = vmatpush.msra.mxu0 0.0
        %561 = vmatpush.msra.mxu0 0.0
        %562 = vmatpush.msra.mxu0 0.0
        %563 = vmatpush.msra.mxu0 0.0
        %564 = vmatpush.msra.mxu0 0.0
        %565 = vmatpush.msra.mxu0 0.0
        %566 = vmatpush.msra.mxu0 0.0
        %567 = vmatpush.msra.mxu0 0.0
        %568 = vmatpush.msra.mxu0 %v416
        %569 = vmatmul.f32.gmra.mxu0 %v548
        %v570 = vpop.f32.mrf.mxu0
        %v571 = vadd.f32 %v540, %v570
        %572 = vmatmul.f32.gmra.mxu0 %v551
        %v573 = vpop.f32.mrf.mxu0
        %v574 = vadd.f32 %v545, %v573
        %575 = vdwg.mxu0
        %576 = vmatpush.msra.mxu0 0.0
        %577 = vmatpush.msra.mxu0 0.0
        %578 = vmatpush.msra.mxu0 0.0
        %579 = vmatpush.msra.mxu0 0.0
        %580 = vmatpush.msra.mxu0 0.0
        %581 = vmatpush.msra.mxu0 0.0
        %582 = vmatpush.msra.mxu0 0.0
        %583 = vmatpush.msra.mxu0 0.0
        %584 = vmatpush.msra.mxu0 0.0
        %585 = vmatpush.msra.mxu0 0.0
        %586 = vmatpush.msra.mxu0 0.0
        %587 = vmatpush.msra.mxu0 0.0
        %588 = vmatpush.msra.mxu0 0.0
        %589 = vmatpush.msra.mxu0 0.0
        %590 = vmatpush.msra.mxu0 0.0
        %591 = vmatpush.msra.mxu0 %v417
        %592 = vmatmul.f32.gmra.mxu0 %v548
        %v593 = vpop.f32.mrf.mxu0
        %v594 = vadd.f32 %v540, %v593
        %595 = vmatmul.f32.gmra.mxu0 %v551
        %v596 = vpop.f32.mrf.mxu0
        %v597 = vadd.f32 %v545, %v596
        %598 = vdwg.mxu0
        %599 = vmatpush.msra.mxu0 0.0
        %600 = vmatpush.msra.mxu0 0.0
        %601 = vmatpush.msra.mxu0 0.0
        %602 = vmatpush.msra.mxu0 0.0
        %603 = vmatpush.msra.mxu0 0.0
        %604 = vmatpush.msra.mxu0 0.0
        %605 = vmatpush.msra.mxu0 0.0
        %606 = vmatpush.msra.mxu0 0.0
        %607 = vmatpush.msra.mxu0 0.0
        %608 = vmatpush.msra.mxu0 0.0
        %609 = vmatpush.msra.mxu0 0.0
        %610 = vmatpush.msra.mxu0 0.0
        %611 = vmatpush.msra.mxu0 0.0
        %612 = vmatpush.msra.mxu0 0.0
        %613 = vmatpush.msra.mxu0 0.0
        %614 = vmatpush.msra.mxu0 %v418
        %615 = vmatmul.f32.gmra.mxu0 %v548
        %v616 = vpop.f32.mrf.mxu0
        %v617 = vadd.f32 %v540, %v616
        %618 = vmatmul.f32.gmra.mxu0 %v551
        %v619 = vpop.f32.mrf.mxu0
        %v620 = vadd.f32 %v545, %v619
        %621 = vdwg.mxu0
        %622 = vmatpush.msra.mxu0 0.0
        %623 = vmatpush.msra.mxu0 0.0
        %624 = vmatpush.msra.mxu0 0.0
        %625 = vmatpush.msra.mxu0 0.0
        %626 = vmatpush.msra.mxu0 0.0
        %627 = vmatpush.msra.mxu0 0.0
        %628 = vmatpush.msra.mxu0 0.0
        %629 = vmatpush.msra.mxu0 0.0
        %630 = vmatpush.msra.mxu0 0.0
        %631 = vmatpush.msra.mxu0 0.0
        %632 = vmatpush.msra.mxu0 0.0
        %633 = vmatpush.msra.mxu0 0.0
        %634 = vmatpush.msra.mxu0 0.0
        %635 = vmatpush.msra.mxu0 0.0
        %636 = vmatpush.msra.mxu0 0.0
        %637 = vmatpush.msra.mxu0 %v419
        %638 = vmatmul.f32.gmra.mxu0 %v548
        %v639 = vpop.f32.mrf.mxu0
        %v640 = vadd.f32 %v540, %v639
        %641 = vmatmul.f32.gmra.mxu0 %v551
        %v642 = vpop.f32.mrf.mxu0
        %v643 = vadd.f32 %v545, %v642
        %644 = vdwg.mxu0
        %v645 = vmul.f32 %v459, %v571
        %v646 = vmul.f32 %v482, %v594
        %v647 = vmul.f32 %v505, %v617
        %v648 = vmul.f32 %v528, %v640
        %v649 = vmul.f32 %v462, %v574
        %v650 = vmul.f32 %v485, %v597
        %v651 = vmul.f32 %v508, %v620
        %v652 = vmul.f32 %v531, %v643
        %v653 = vpack.c.bf16 %v646, %v645
        %v654 = vpack.c.bf16 %v648, %v647
        %v655 = vpack.c.bf16 %v650, %v649
        %v656 = vpack.c.bf16 %v652, %v651
        %657 = vst [vmem:[%s393] sm:$0xff] %v653
        %658 = vst [vmem:[%s393 + $0x8] sm:$0xff] %v654
        %659 = vst [vmem:[%s393 + $0x10] sm:$0xff] %v655
        %660 = vst [vmem:[%s393 + $0x18] sm:$0xff] %v656
        %v661 = vrot.slane %v412, 4
        %v662 = vmax.f32 %v412, %v661
        %v663 = vrot.slane %v662, 2
        %v664 = vmax.f32 %v662, %v663
        %v665 = vrot.slane %v664, 1
        %v666 = vmax.f32 %v664, %v665
        %v667 = vrot.slane %v413, 4
        %v668 = vmax.f32 %v413, %v667
        %v669 = vrot.slane %v668, 2
        %v670 = vmax.f32 %v668, %v669
        %v671 = vrot.slane %v670, 1
        %v672 = vmax.f32 %v670, %v671
        %v673 = vrot.slane %v414, 4
        %v674 = vmax.f32 %v414, %v673
        %v675 = vrot.slane %v674, 2
        %v676 = vmax.f32 %v674, %v675
        %v677 = vrot.slane %v676, 1
        %v678 = vmax.f32 %v676, %v677
        %v679 = vrot.slane %v415, 4
        %v680 = vmax.f32 %v415, %v679
        %v681 = vrot.slane %v680, 2
        %v682 = vmax.f32 %v680, %v681
        %v683 = vrot.slane %v682, 1
        %v684 = vmax.f32 %v682, %v683
        %v685 = vrot.slane %v412, 4
        %v686 = vadd.f32 %v412, %v685
        %v687 = vrot.slane %v686, 2
        %v688 = vadd.f32 %v686, %v687
        %v689 = vrot.slane %v688, 1
        %v690 = vadd.f32 %v688, %v689
        %v691 = vrot.slane %v413, 4
        %v692 = vadd.f32 %v413, %v691
        %v693 = vrot.slane %v692, 2
        %v694 = vadd.f32 %v692, %v693
        %v695 = vrot.slane %v694, 1
        %v696 = vadd.f32 %v694, %v695
        %v697 = vrot.slane %v414, 4
        %v698 = vadd.f32 %v414, %v697
        %v699 = vrot.slane %v698, 2
        %v700 = vadd.f32 %v698, %v699
        %v701 = vrot.slane %v700, 1
        %v702 = vadd.f32 %v700, %v701
        %v703 = vrot.slane %v415, 4
        %v704 = vadd.f32 %v415, %v703
        %v705 = vrot.slane %v704, 2
        %v706 = vadd.f32 %v704, %v705
        %v707 = vrot.slane %v706, 1
        %v708 = vadd.f32 %v706, %v707
        %v709 = vrcp.pop 8.0
        %v710 = vmul.f32 8.0, %v709
        %v711 = vsub.f32 1.0, %v710
        %v712 = vmul.f32 %v709, %v711
        %v713 = vadd.f32 %v709, %v712
        %vm714 = vweird.f32 %v709
        %v715 = vsel %vm714, %v709, %v713
        %v716 = vmul.f32 %v690, %v715
        %v717 = vmul.f32 %v696, %v715
        %v718 = vmul.f32 %v702, %v715
        %v719 = vmul.f32 %v708, %v715
        %v720 = vlaneseq
        %v721 = vshrl.u32 %v720, 7
        %vm722 = vcmp.eq.s32.totalorder %v721, 0
        %v723 = vsel %vm722, %v666, %v716
        %v724 = vsel %vm722, %v672, %v717
        %v725 = vsel %vm722, %v678, %v718
        %v726 = vsel %vm722, %v684, %v719
        %v731 = vrot.slane %v724, 6
        %v732 = vrot.slane %v725, 4
        %v733 = vrot.slane %v726, 2
        %vm734 = vcmask 1041408
        %v735 = vsel %vm734, %v723, %v731
        %vm736 = vcmask 1045508
        %v737 = vsel %vm736, %v732, %v733
        %vm738 = vcmask 1043456
        %v739 = vsel %vm738, %v735, %v737
        %741 = vst [vmem:[%s400] sm:$0xff] %v739
        %s742 = smul.u32 %s37, 512
        %v743 = vlaneseq
        %v744 = vand.u32 %v743, 127
        %v745 = vadd.s32 %v744, 128
        %v746 = vadd.s32 %v744, 256
        %v747 = vadd.s32 %v744, 384
        %v748 = vstv %s742
        %v749 = vadd.s32 %v748, %v744
        %v750 = vadd.s32 %v748, %v745
        %v751 = vadd.s32 %v748, %v746
        %v752 = vadd.s32 %v748, %v747
        %vm753 = vcmp.lt.s32.totalorder %v749, 512
        %vm754 = vcmp.lt.s32.totalorder %v750, 512
        %vm755 = vcmp.lt.s32.totalorder %v751, 512
        %vm756 = vcmp.lt.s32.totalorder %v752, 512
        %v757 = vsel %vm753, %v416, 0.0
        %v758 = vsel %vm754, %v417, 0.0
        %v759 = vsel %vm755, %v418, 0.0
        %v760 = vsel %vm756, %v419, 0.0
        %v761 = vadd.f32 %v757, %v758
        %v762 = vadd.f32 %v761, %v759
        %v763 = vadd.f32 %v762, %v760
        %764 = vadd.xlane.f32.xlu0 %v763
        %v765 = vpop.xlane.xlu0 %764
        %766 = vst [vmem:[%s407] sm:$0xff] %v765
        %s767 = sand.u32 %s194, 1
        %s768 = scalar_lea.sflag [#allocation4], %s767
        %s769 = sand.u32 %s194, 1
        %s770 = smul.addr %s769, 32
        %s771 = scalar_lea.vmem [#allocation7], %s770
        %s772 = sand.u32 %s32, 1
        %s773 = scalar_lea.sflag [#allocation9], %s772
        %s774 = sand.u32 %s222, 1
        %s775 = smul.addr %s774, 8
        %s776 = scalar_lea.vmem [#allocation8], %s775
        %s777 = sand.u32 %s32, 1
        %s778 = scalar_lea.sflag [#allocation9], %s777
        %s779 = sand.u32 %s250, 1
        %s780 = smul.addr %s779, 8
        %s781 = scalar_lea.vmem [#allocation10], %s780
        // Predicated region
        $region53: #{tpu_custom_call.1} parent=43 // pred_check
          %p782 = pneg %p204
        $region54: #{tpu_custom_call.1} parent=43 // pred_check_branch
          %784 = sbr.rel (%p782) target = $region56
        $region55: #{tpu_custom_call.1} parent=43 // pred_region
          %s785 = smul.u32 4, %s37
          %787 = vsyncadd %s768, 0
          %s788 = smul.addr %s36, 8
          %s789 = sadd.s32 %s785, %s788
          %s790 = smul.addr %s789, 4
          %s791 = scalar_lea.hbm %s6, %s790
          %s792 = sshll.u32 %s771, 4
          %s793 = int_to_ptr.vmem [resolvable:$true] %s792
          %s794 = sshll.u32 %s791, 4
          %s795 = int_to_ptr.hbm [resolvable:$true] %s794
          %800 = dma.vmem_to_hbm [thread:$0]  %s793, 512, %s795, %s768, 256, 256, 16
        $region56: #{tpu_custom_call.1} parent=43 // pred_fallthru
          _
        // Predicated region
        $region57: #{tpu_custom_call.1} parent=43 // pred_check
          %p801 = pneg %p232
        $region58: #{tpu_custom_call.1} parent=43 // pred_check_branch
          %803 = sbr.rel (%p801) target = $region60
        $region59: #{tpu_custom_call.1} parent=43 // pred_region
          %s804 = smul.u32 4, %s37
          %806 = vsyncadd %s773, 0
          %s807 = smul.addr %s36, 4
          %s808 = sadd.s32 %s804, %s807
          %s809 = smul.addr %s808, 2
          %s810 = scalar_lea.hbm %s7, %s809
          %s812 = sshll.u32 %s776, 4
          %s813 = int_to_ptr.vmem [resolvable:$true] %s812
          %s814 = sshll.u32 %s810, 4
          %s815 = int_to_ptr.hbm [resolvable:$true] %s814
          %817 = dma.vmem_to_hbm [thread:$0]  %s813, 128, %s815, %s773
        $region60: #{tpu_custom_call.1} parent=43 // pred_fallthru
          _
        // Predicated region
        $region61: #{tpu_custom_call.1} parent=43 // pred_check
          %p818 = pneg %p260
        $region62: #{tpu_custom_call.1} parent=43 // pred_check_branch
          %820 = sbr.rel (%p818) target = $region64
        $region63: #{tpu_custom_call.1} parent=43 // pred_region
          %822 = vsyncadd %s778, 0
          %s823 = sadd.s32 %s37, %s36
          %s824 = smul.addr %s823, 8
          %s825 = scalar_lea.hbm %s8, %s824
          %s827 = sshll.u32 %s781, 4
          %s828 = int_to_ptr.vmem [resolvable:$true] %s827
          %s829 = sshll.u32 %s825, 4
          %s830 = int_to_ptr.hbm [resolvable:$true] %s829
          %832 = dma.vmem_to_hbm [thread:$0]  %s828, 128, %s830, %s778
        $region64: #{tpu_custom_call.1} parent=43 // pred_fallthru
          _
      $region44: #{tpu_custom_call.1} parent=5 // pred_fallthru
        _
      %p833 = scmp.le.s32.totalorder 2, %s27
      // Predicated region
      $region65: #{tpu_custom_call.1} parent=5 // pred_check
        %p834 = pneg %p833
      $region66: #{tpu_custom_call.1} parent=5 // pred_check_branch
        %836 = sbr.rel (%p834) target = $region68
      $region67: #{tpu_custom_call.1} parent=5 // pred_region
        %s837 = ssub.s32 %s27, 2
        // Predicated region
        $region69: #{tpu_custom_call.1} parent=67 // pred_check
          %p838 = pneg %p210
        $region70: #{tpu_custom_call.1} parent=67 // pred_check_branch
          %840 = sbr.rel (%p838) target = $region72
        $region71: #{tpu_custom_call.1} parent=67 // pred_region
          %s841 = sand.u32 %s195, 1
          %s842 = scalar_lea.sflag [#allocation4], %s841
          %s843 = sand.u32 %s195, 1
          %s844 = smul.addr %s843, 32
          %s845 = scalar_lea.vmem [#allocation7], %s844
          %847 = dma.done %s842, 512
        $region72: #{tpu_custom_call.1} parent=67 // pred_fallthru
          _
        // Predicated region
        $region73: #{tpu_custom_call.1} parent=67 // pred_check
          %p848 = pneg %p238
        $region74: #{tpu_custom_call.1} parent=67 // pred_check_branch
          %850 = sbr.rel (%p848) target = $region76
        $region75: #{tpu_custom_call.1} parent=67 // pred_region
          %s851 = sand.u32 %s33, 1
          %s852 = scalar_lea.sflag [#allocation9], %s851
          %s853 = sand.u32 %s223, 1
          %s854 = smul.addr %s853, 8
          %s855 = scalar_lea.vmem [#allocation8], %s854
          %857 = dma.done %s852, 128
        $region76: #{tpu_custom_call.1} parent=67 // pred_fallthru
          _
        // Predicated region
        $region77: #{tpu_custom_call.1} parent=67 // pred_check
          %p858 = pneg %p266
        $region78: #{tpu_custom_call.1} parent=67 // pred_check_branch
          %860 = sbr.rel (%p858) target = $region80
        $region79: #{tpu_custom_call.1} parent=67 // pred_region
          %s861 = sand.u32 %s33, 1
          %s862 = scalar_lea.sflag [#allocation9], %s861
          %s863 = sand.u32 %s251, 1
          %s864 = smul.addr %s863, 8
          %s865 = scalar_lea.vmem [#allocation10], %s864
          %867 = dma.done %s862, 128
        $region80: #{tpu_custom_call.1} parent=67 // pred_fallthru
          _
      $region68: #{tpu_custom_call.1} parent=5 // pred_fallthru
        _
    $region6: #{tpu_custom_call.1} parent=1 // loop_footer
      %s31 = sadd.s32 1, %s27
    $region7: #{tpu_custom_call.1} parent=1 // loop_footer_branch
      %26 = sbr.rel target = $region3
    $region8: #{tpu_custom_call.1} parent=1 // loop_exit
      _
    %868 = vsyncpa [#allocation3], 1
    %s869 = scalar_lea.sflag [#allocation3], 1
    %870 = vsyncpa %s869, 1
    %871 = vsyncpa [#allocation6], 1
    %s872 = scalar_lea.sflag [#allocation6], 1
    %873 = vsyncpa %s872, 1
    %874 = vsyncpa [#allocation4], 1
    %s875 = scalar_lea.sflag [#allocation4], 1
    %876 = vsyncpa %s875, 1
    %877 = vsyncpa [#allocation9], 1
    %s878 = scalar_lea.sflag [#allocation9], 1
    %879 = vsyncpa %s878, 1

</llo_original>
